<compile_context>
chip_gen: v5e
topology: v5e:2x2
jax: 0.10.0
libtpu: 0.0.40
codegen_flags: <defaults>
</compile_context>

<pallas_src>
import jax
import jax.numpy as jnp
import numpy as np
from jax.experimental import pallas as pl
from jax.experimental.pallas import tpu as pltpu


def _round_up(x: int, m: int) -> int:
    return ((x + m - 1) // m) * m


def lwa_score_kernel(b_ref, w_ref, item_ref, o_ref):
    """Score one lane-dense tile of items.

    b_ref:    (1,)        scalar bias (SMEM)
    w_ref:    (1, E)      precomputed weight row (VMEM, resident across grid)
    item_ref: (E, TILE_N) tile of transposed item embeddings (VMEM, streamed)
    o_ref:    (1, TILE_N) sigmoid scores (lane-dense output)
    """
    logits = (
        jnp.dot(w_ref[...], item_ref[...], preferred_element_type=jnp.float32)
        + b_ref[0]
    )
    o_ref[...] = jax.nn.sigmoid(logits).astype(o_ref.dtype)


@jax.jit
def lwa_forward(b, w0, w1, r0, r1, item_embed):
    """Pallas implementation of LWARec.forward.

    b:          (1,)   scalar bias parameter
    w0, w1:     (E, E) weight parameters
    r0, r1:     (E,)   task representation vectors
    item_embed: (N, E) item embeddings
    returns:    (N,)   sigmoid scores
    """
    f32 = jnp.float32
    E = w0.shape[0]
    N = item_embed.shape[0]

    b_s = jnp.asarray(b, f32).reshape(1)

    # --- weight precompute (hoisted out of the streamed kernel) -------------
    # weight_row = (w0 @ r0 + w1 @ r1)^T = [r0 | r1] @ [[w0^T], [w1^T]]
    # single fused (1,2E)@(2E,E) contraction, lane-dense (1,E) result.
    r_cat = jnp.concatenate(
        [jnp.asarray(r0, f32), jnp.asarray(r1, f32)]
    ).reshape(1, 2 * E)
    w_stack = jnp.concatenate(
        [jnp.asarray(w0, f32).T, jnp.asarray(w1, f32).T], axis=0
    )  # (2E, E)
    weight_row = jnp.dot(r_cat, w_stack, precision=jax.lax.Precision.HIGHEST)

    # --- lane-dense item stream: E on sublanes, items on lanes --------------
    item_t = jnp.asarray(item_embed, f32).T  # (E, N)

    # Tile sizing: biggest lane-multiple tile whose double-buffered copy stays
    # well inside VMEM on every generation (v7x scoped default is smallest).
    lane_n = _round_up(max(N, 1), 128)
    tile_budget_bytes = 8 * 1024 * 1024          # per item-tile buffer
    tile_cap = max(128, min(2048, (tile_budget_bytes // (E * 4)) // 128 * 128))
    tile_n = min(tile_cap, lane_n)
    n_pad = _round_up(lane_n, tile_n)
    if n_pad != N:
        item_t = jnp.pad(item_t, ((0, 0), (0, n_pad - N)))

    grid = (n_pad // tile_n,)

    # Explicit VMEM budget: double-buffered item + output tiles, resident
    # weight row, plus headroom; capped at v7x physical (64 MiB).
    vmem_limit = int(
        min(
            64 * 1024 * 1024,
            max(
                16 * 1024 * 1024,
                2 * (E * tile_n + tile_n) * 4 + E * 4 + 4 * 1024 * 1024,
            ),
        )
    )

    out = pl.pallas_call(
        lwa_score_kernel,
        out_shape=jax.ShapeDtypeStruct((1, n_pad), f32),
        grid=grid,
        in_specs=[
            pl.BlockSpec(memory_space=pltpu.MemorySpace.SMEM),  # b (scalar)
            pl.BlockSpec((1, E), lambda i: (0, 0)),             # weight row (resident)
            pl.BlockSpec((E, tile_n), lambda i: (0, i)),        # item tiles (streamed)
        ],
        out_specs=pl.BlockSpec((1, tile_n), lambda i: (0, i)),
        compiler_params=pltpu.CompilerParams(
            dimension_semantics=("parallel",),
            vmem_limit_bytes=vmem_limit,
        ),
        cost_estimate=pl.CostEstimate(
            flops=2 * n_pad * E,
            transcendentals=n_pad,
            bytes_accessed=(n_pad * E + E + n_pad + 1) * 4,
        ),
    )(b_s, weight_row, item_t)

    return out[0, :N]


def lwa_reference(b, w0, w1, r0, r1, item_embed):
    hi = jax.lax.Precision.HIGHEST
    weight = jnp.dot(w0, r0, precision=hi) + jnp.dot(w1, r1, precision=hi)
    logits = jnp.dot(item_embed, weight, precision=hi) + b[0]
    return jax.nn.sigmoid(logits)


if __name__ == "__main__":
    E = 32   # embeddingSize
    N = 16   # number of items scored

    key = jax.random.PRNGKey(0)
    kb, kw0, kw1, kr0, kr1, ki = jax.random.split(key, 6)

    # Deterministic synthetic parameters (matching nn.Parameter(torch.randn(...)))
    b = jax.random.normal(kb, (1,), dtype=jnp.float32)
    w0 = jax.random.normal(kw0, (E, E), dtype=jnp.float32)
    w1 = jax.random.normal(kw1, (E, E), dtype=jnp.float32)

    # Forward inputs
    R0 = jax.random.normal(kr0, (E,), dtype=jnp.float32)
    R1 = jax.random.normal(kr1, (E,), dtype=jnp.float32)
    itemEmbed = jax.random.normal(ki, (N, E), dtype=jnp.float32)

    out = jax.block_until_ready(lwa_forward(b, w0, w1, R0, R1, itemEmbed))
    ref = jax.block_until_ready(lwa_reference(b, w0, w1, R0, R1, itemEmbed))

    assert out.shape == (N,)
    np.testing.assert_allclose(np.asarray(out), np.asarray(ref), rtol=1e-5, atol=1e-5)

    print("KERNEL_OK")
</pallas_src>

<mosaic_0001>
module attributes {stable_mosaic.version = 11 : i64} {
  func.func @lwa_score_kernel(%arg0: i32, %arg1: memref<1xf32, #tpu.memory_space<smem>>, %arg2: memref<1x32xf32, #tpu.memory_space<vmem>>, %arg3: memref<32x128xf32, #tpu.memory_space<vmem>>, %arg4: memref<1x128xf32, #tpu.memory_space<vmem>>) attributes {dimension_semantics = [#tpu.dimension_semantics<parallel>], iteration_bounds = array<i64: 1>, scalar_prefetch = 0 : i64, scratch_operands = 0 : i64, tpu.core_type = #tpu.core_type<tc>, window_params = [{transform_indices = @transform_0, window_bounds = array<i64: 1>}, {pipeline_mode = #tpu.pipeline_mode<synchronous>, transform_indices = @transform_1, window_bounds = array<i64: 1, 32>}, {transform_indices = @transform_2, window_bounds = array<i64: 32, 128>}, {transform_indices = @transform_3, window_bounds = array<i64: 1, 128>}]} {
    %c0 = arith.constant 0 : index
    %c0_0 = arith.constant 0 : index
    %0 = vector.load %arg2[%c0, %c0_0] : memref<1x32xf32, #tpu.memory_space<vmem>>, vector<1x32xf32>
    %c0_1 = arith.constant 0 : index
    %c0_2 = arith.constant 0 : index
    %1 = vector.load %arg3[%c0_1, %c0_2] : memref<32x128xf32, #tpu.memory_space<vmem>>, vector<32x128xf32>
    %cst = arith.constant dense<0.000000e+00> : vector<1x128xf32>
    %2 = tpu.matmul %0, %1, %cst {dimension_numbers = #tpu.dot_dimension_numbers<[1], [0], [0], [1], [0, 0, 1, 1], [], []>} : vector<1x32xf32>, vector<32x128xf32>, vector<1x128xf32> -> vector<1x128xf32>
    %c0_3 = arith.constant 0 : index
    %3 = memref.load %arg1[%c0_3] : memref<1xf32, #tpu.memory_space<smem>>
    %4 = vector.broadcast %3 : f32 to vector<1x128xf32>
    %5 = arith.addf %2, %4 : vector<1x128xf32>
    %6 = arith.negf %5 : vector<1x128xf32>
    %7 = math.exp %6 : vector<1x128xf32>
    %cst_4 = arith.constant 1.000000e+00 : f32
    %8 = vector.broadcast %cst_4 : f32 to vector<1x128xf32>
    %9 = arith.addf %8, %7 : vector<1x128xf32>
    %10 = arith.divf %8, %9 : vector<1x128xf32>
    %c0_5 = arith.constant 0 : index
    %c0_6 = arith.constant 0 : index
    %11 = vector.load %arg4[%c0_5, %c0_6] : memref<1x128xf32, #tpu.memory_space<vmem>>, vector<1x128xf32>
    tpu.vector_store %arg4[%c0_5, %c0_6], %10 {strides = array<i32>} : memref<1x128xf32, #tpu.memory_space<vmem>>, vector<1x128xf32>,
    return
  }
  func.func @transform_0(%arg0: i32) -> i32 {
    %c0_i32 = arith.constant 0 : i32
    %c0_i32_0 = arith.constant 0 : i32
    return %c0_i32 : i32
  }
  func.func @transform_1(%arg0: i32) -> (i32, i32) {
    %c0_i32 = arith.constant 0 : i32
    %c0_i32_0 = arith.constant 0 : i32
    %c0_i32_1 = arith.constant 0 : i32
    return %c0_i32, %c0_i32_0 : i32, i32
  }
  func.func @transform_2(%arg0: i32) -> (i32, i32) {
    %c0_i32 = arith.constant 0 : i32
    %c0_i32_0 = arith.constant 0 : i32
    return %c0_i32, %arg0 : i32, i32
  }
  func.func @transform_3(%arg0: i32) -> (i32, i32) {
    %c0_i32 = arith.constant 0 : i32
    %c0_i32_0 = arith.constant 0 : i32
    return %c0_i32, %arg0 : i32, i32
  }
}

</mosaic_0001>

<llo_original>
// kernel: lwa_forward.1
$region0: #{lwa_forward.1}
  #allocation0 [shape = 'u32[]', space=smem, size = 0x4, offset = 0x4, fixed_abs, tag = 'smem constant byte address 0x4 - core index']
  #allocation1 [shape = 'u32[72,128]{1,0:T(1,128)}', space=vmem, size = 0x9000, scoped, tag = 'internal scratch']
  #allocation2 [shape = 'f32[1]{0:T(128)S(6)}', space=smem, size = 0x200, scoped, tag = 'scoped memory for lwa_forward.1']
  %s0 = inlined_call_operand.<no memory space> [shape: f32[1], index: 0, kind: input, shape index: {}]
  %s1 = inlined_call_operand.vmem [shape: f32[1,32], index: 1, kind: input, shape index: {}]
  %s2 = inlined_call_operand.vmem [shape: f32[32,128], index: 2, kind: input, shape index: {}]
  %s3 = inlined_call_operand.vmem [shape: f32[1,128], index: 3, kind: output, shape index: {}]
  %s4 = sld [smem:[#allocation0]]
  $region22: #{lwa_forward.1} parent=0
    _
  %s6 = ssub.s32 1, %s4
  %s7 = scalar_select 0, %s6, %s4
  %8 = sst [smem:[#allocation2]] %s0
  // Predicated region
  $region2: #{lwa_forward.1} parent=0 // pred_check
    _
  $region3: #{lwa_forward.1} parent=0 // pred_check_branch
    %10 = sbr.rel (0) target = $region5
  $region4: #{lwa_forward.1} parent=0 // pred_region
    _
  $region5: #{lwa_forward.1} parent=0 // pred_fallthru
    _
  // Predicated region
  $region6: #{lwa_forward.1} parent=0 // pred_check
    _
  $region7: #{lwa_forward.1} parent=0 // pred_check_branch
    %12 = sbr.rel (0) target = $region9
  $region8: #{lwa_forward.1} parent=0 // pred_region
    _
  $region9: #{lwa_forward.1} parent=0 // pred_fallthru
    _
  // Predicated region
  $region10: #{lwa_forward.1} parent=0 // pred_check
    _
  $region11: #{lwa_forward.1} parent=0 // pred_check_branch
    %14 = sbr.rel (0) target = $region13
  $region12: #{lwa_forward.1} parent=0 // pred_region
    _
  $region13: #{lwa_forward.1} parent=0 // pred_fallthru
    _
  %v15 = vld [vmem:[%s1] sm:$0x1]
  %v16 = vld [vmem:[%s2] sm:$0xff]
  %v17 = vld [vmem:[%s2 + $0x8] sm:$0xff]
  %v18 = vld [vmem:[%s2 + $0x10] sm:$0xff]
  %v19 = vld [vmem:[%s2 + $0x18] sm:$0xff]
  %s20 = sld [smem:[#allocation2]]
  %v21 = vstv %s20
  %vm22 = vcmask 261120
  %v24 = vsel %vm22, %v15, 0
  %26 = vmatpush.msra.mxu0 0.0
  %27 = vmatpush.msra.mxu0 0.0
  %28 = vmatpush.msra.mxu0 0.0
  %29 = vmatpush.msra.mxu0 0.0
  %30 = vmatpush.msra.mxu0 0.0
  %31 = vmatpush.msra.mxu0 0.0
  %32 = vmatpush.msra.mxu0 0.0
  %33 = vmatpush.msra.mxu0 0.0
  %34 = vmatpush.msra.mxu0 0.0
  %35 = vmatpush.msra.mxu0 0.0
  %36 = vmatpush.msra.mxu0 0.0
  %37 = vmatpush.msra.mxu0 0.0
  %38 = vmatpush.msra.mxu0 %v19
  %39 = vmatpush.msra.mxu0 %v18
  %40 = vmatpush.msra.mxu0 %v17
  %41 = vmatpush.msra.mxu0 %v16
  %42 = vmatmul.f32.gmra.mxu0 %v24
  %v43 = vpop.f32.mrf.mxu0
  %v44 = vadd.f32 %v21, %v43
  %45 = vdwg.mxu0
  %v46 = vxor.u32 %v44, 2147483648
  %v47 = vmul.f32 %v46, 1.442695
  %v48 = vpow.pop %v47
  %v49 = vadd.f32 %v48, 1.0
  %v50 = vrcp.pop %v49
  %v51 = vmul.f32 %v49, %v50
  %v52 = vsub.f32 1.0, %v51
  %v53 = vmul.f32 %v50, %v52
  %v54 = vadd.f32 %v50, %v53
  %vm55 = vweird.f32 %v49
  %vm56 = vweird.f32 %v50
  %vm57 = vmor %vm55, %vm56
  %v58 = vsel %vm57, %v50, %v54
  %v59 = vand.u32 2147483647, %v49
  %vm60 = vcmp.eq.f32.partialorder %v59, 8.507059e+37
  %v61 = vand.u32 %v49, 2147483648
  %v62 = vor.u32 1.1754944e-38, %v61
  %v63 = vsel %vm60, %v62, %v58
  %v64 = vmul.f32 1.0, %v63
  %65 = vst [vmem:[%s3] sm:$0x1] %v64
  // Predicated region
  $region14: #{lwa_forward.1} parent=0 // pred_check
    _
  $region15: #{lwa_forward.1} parent=0 // pred_check_branch
    %67 = sbr.rel (0) target = $region17
  $region16: #{lwa_forward.1} parent=0 // pred_region
    _
  $region17: #{lwa_forward.1} parent=0 // pred_fallthru
    _
  // Predicated region
  $region18: #{lwa_forward.1} parent=0 // pred_check
    _
  $region19: #{lwa_forward.1} parent=0 // pred_check_branch
    %69 = sbr.rel (0) target = $region21
  $region20: #{lwa_forward.1} parent=0 // pred_region
    _
  $region21: #{lwa_forward.1} parent=0 // pred_fallthru
    _

</llo_original>
